<compile_context>
chip_gen: v5e
topology: v5e:2x2
jax: 0.10.0
libtpu: 0.0.40
codegen_flags: <defaults>
</compile_context>

<pallas_src>
import math

import jax
import jax.numpy as jnp
from jax.experimental import pallas as pl
from jax.experimental.pallas import tpu as pltpu

_LOG_2PI = math.log(2.0 * math.pi)


def _softplus(x):
    # numerically-stable softplus, matches F.softplus semantics
    return jnp.maximum(x, 0.0) + jnp.log1p(jnp.exp(-jnp.abs(x)))


def _policy_kernel(ab_ref, x_ref, w1_ref, b1_ref, wh_ref, bh_ref, eps_ref,
                   act_ref, logp_ref):
    action_bound = ab_ref[0]                     # SMEM scalar
    A = act_ref.shape[1]                         # static action_dim

    # fc1 + relu (K=3 matmul; MXU pads internally, not the binding unit)
    h = jnp.dot(x_ref[...], w1_ref[...], preferred_element_type=jnp.float32)
    h = jnp.maximum(h + b1_ref[...], 0.0)

    # fused fc_mu / fc_std head: one matmul, columns [:A]=mu, [A:2A]=std_pre
    head = jnp.dot(h, wh_ref[...], preferred_element_type=jnp.float32) + bh_ref[...]
    mu = head[:, :A]
    std = _softplus(head[:, A:])

    # Normal(mu, std).rsample() with externally supplied standard-normal noise
    eps = eps_ref[...]
    z = mu + std * eps

    # Normal(mu, std).log_prob(z); (z - mu)/std == eps exactly, skip the divide.
    log_prob = -0.5 * jnp.square(eps) - jnp.log(std) - 0.5 * _LOG_2PI

    a = jnp.tanh(z)
    # NOTE: the reference applies tanh twice in the correction term
    # (torch.tanh(action) where action is already tanh(sample)); reproduced
    # exactly for bug-for-bug parity with the PyTorch module.
    log_prob = log_prob - jnp.log(1.0 - jnp.square(jnp.tanh(a)) + 1e-07)

    act_ref[...] = a * action_bound
    logp_ref[...] = log_prob


def _round_up(n, m):
    return ((n + m - 1) // m) * m


def prepare_params(params):
    """One-time parameter prep (hoisted out of the per-call path).

    Weights are stored as [in_features, out_features] (y = x @ W + b, i.e. the
    transpose of PyTorch nn.Linear.weight).  No feature padding is needed:
    resident full-array blocks are legal for any shape.
    """
    w1, b1, wmu, bmu, wstd, bstd = params
    w1 = jnp.asarray(w1, jnp.float32)
    H = w1.shape[1]
    A = wmu.shape[1]
    wh = jnp.concatenate([jnp.asarray(wmu, jnp.float32),
                          jnp.asarray(wstd, jnp.float32)], axis=1)      # [H, 2A]
    bh = jnp.concatenate([jnp.asarray(bmu, jnp.float32),
                          jnp.asarray(bstd, jnp.float32)]).reshape(1, 2 * A)
    return {"w1": w1,
            "b1": jnp.asarray(b1, jnp.float32).reshape(1, H),
            "wh": wh, "bh": bh, "A": A}


def policy_net_forward(x, prepared, eps, action_bound, *, batch_tile=1024):
    """x: [B, state_dim] f32, eps: [B, action_dim] f32 (rsample noise).
    Returns (action [B, action_dim], log_prob [B, action_dim])."""
    B, S = x.shape
    A = prepared["A"]

    # Batch tiling: single tile for small batches, 1024-row tiles otherwise.
    if B <= batch_tile:
        B_pad = max(8, _round_up(B, 8))
        tb = B_pad
    else:
        B_pad = _round_up(B, batch_tile)
        tb = batch_tile

    # Only pad ragged batches (feature dims are never padded).
    if B_pad != B:
        x = jnp.zeros((B_pad, S), jnp.float32).at[:B].set(x)
        eps = jnp.zeros((B_pad, A), jnp.float32).at[:B].set(eps)
    ab = jnp.asarray([action_bound], jnp.float32)

    stream = lambda w: pl.BlockSpec((tb, w), lambda i: (i, 0))       # batch-tiled
    resident = lambda shape: pl.BlockSpec(shape, lambda i: (0, 0))   # grid-resident

    act, logp = pl.pallas_call(
        _policy_kernel,
        out_shape=(jax.ShapeDtypeStruct((B_pad, A), jnp.float32),
                   jax.ShapeDtypeStruct((B_pad, A), jnp.float32)),
        grid=(B_pad // tb,),
        in_specs=[
            pl.BlockSpec(memory_space=pltpu.MemorySpace.SMEM),  # action_bound
            stream(S),                                          # x
            resident(prepared["w1"].shape),                     # fc1 weight
            resident(prepared["b1"].shape),                     # fc1 bias
            resident(prepared["wh"].shape),                     # fused mu/std weight
            resident(prepared["bh"].shape),                     # fused mu/std bias
            stream(A),                                          # eps
        ],
        out_specs=(stream(A), stream(A)),
        compiler_params=pltpu.CompilerParams(
            dimension_semantics=("parallel",)),
    )(ab, x, prepared["w1"], prepared["b1"], prepared["wh"], prepared["bh"], eps)

    return act[:B], logp[:B]


def init_params(key, state_dim, hidden_dim, action_dim):
    k1, k2, k3, k4, k5, k6 = jax.random.split(key, 6)

    def lin(kw, kb, fan_in, fan_out):
        bound = 1.0 / math.sqrt(fan_in)
        w = jax.random.uniform(kw, (fan_in, fan_out), jnp.float32, -bound, bound)
        b = jax.random.uniform(kb, (fan_out,), jnp.float32, -bound, bound)
        return w, b

    w1, b1 = lin(k1, k2, state_dim, hidden_dim)
    wmu, bmu = lin(k3, k4, hidden_dim, action_dim)
    wstd, bstd = lin(k5, k6, hidden_dim, action_dim)
    return (w1, b1, wmu, bmu, wstd, bstd)


def _reference(x, params, eps, action_bound):
    w1, b1, wmu, bmu, wstd, bstd = params
    h = jax.nn.relu(x @ w1 + b1)
    mu = h @ wmu + bmu
    std = jax.nn.softplus(h @ wstd + bstd)
    z = mu + std * eps
    logp = -0.5 * jnp.square((z - mu) / std) - jnp.log(std) - 0.5 * _LOG_2PI
    a = jnp.tanh(z)
    logp = logp - jnp.log(1.0 - jnp.square(jnp.tanh(a)) + 1e-07)
    return a * action_bound, logp


if __name__ == "__main__":
    # Pendulum-v1: state_dim=3, action_dim=1, action_bound=2.0, hidden_dim=128
    state_dim, hidden_dim, action_dim = 3, 128, 1
    action_bound = 2.0
    batch = 2

    key = jax.random.PRNGKey(0)
    kp, kx, ke = jax.random.split(key, 3)
    params = init_params(kp, state_dim, hidden_dim, action_dim)
    prepared = prepare_params(params)            # one-time param fusion
    x = jax.random.normal(kx, (batch, state_dim), jnp.float32)
    eps = jax.random.normal(ke, (batch, action_dim), jnp.float32)  # rsample noise

    action, log_prob = policy_net_forward(x, prepared, eps, action_bound)
    jax.block_until_ready((action, log_prob))

    assert action.shape == (batch, action_dim)
    assert log_prob.shape == (batch, action_dim)
    assert bool(jnp.all(jnp.isfinite(action))) and bool(jnp.all(jnp.isfinite(log_prob)))

    ref_action, ref_log_prob = _reference(x, params, eps, action_bound)
    assert bool(jnp.allclose(action, ref_action, atol=1e-4, rtol=1e-4))
    assert bool(jnp.allclose(log_prob, ref_log_prob, atol=1e-4, rtol=1e-4))

    # Multi-tile sanity check: exercises the batch grid + ragged-batch padding.
    kx2, ke2 = jax.random.split(jax.random.PRNGKey(1))
    B2 = 2051
    x2 = jax.random.normal(kx2, (B2, state_dim), jnp.float32)
    eps2 = jax.random.normal(ke2, (B2, action_dim), jnp.float32)
    a2, lp2 = policy_net_forward(x2, prepared, eps2, action_bound)
    jax.block_until_ready((a2, lp2))
    ra2, rlp2 = _reference(x2, params, eps2, action_bound)
    assert bool(jnp.allclose(a2, ra2, atol=1e-4, rtol=1e-4))
    assert bool(jnp.allclose(lp2, rlp2, atol=1e-4, rtol=1e-4))

    print("KERNEL_OK")
</pallas_src>

<mosaic_0001>
module attributes {stable_mosaic.version = 11 : i64} {
  func.func @_policy_kernel(%arg0: i32, %arg1: memref<1xf32, #tpu.memory_space<smem>>, %arg2: memref<8x3xf32, #tpu.memory_space<vmem>>, %arg3: memref<3x128xf32, #tpu.memory_space<vmem>>, %arg4: memref<1x128xf32, #tpu.memory_space<vmem>>, %arg5: memref<128x2xf32, #tpu.memory_space<vmem>>, %arg6: memref<1x2xf32, #tpu.memory_space<vmem>>, %arg7: memref<8x1xf32, #tpu.memory_space<vmem>>, %arg8: memref<8x1xf32, #tpu.memory_space<vmem>>, %arg9: memref<8x1xf32, #tpu.memory_space<vmem>>) attributes {dimension_semantics = [#tpu.dimension_semantics<parallel>], iteration_bounds = array<i64: 1>, scalar_prefetch = 0 : i64, scratch_operands = 0 : i64, tpu.core_type = #tpu.core_type<tc>, window_params = [{transform_indices = @transform_0, window_bounds = array<i64: 1>}, {transform_indices = @transform_1, window_bounds = array<i64: 8, 3>}, {pipeline_mode = #tpu.pipeline_mode<synchronous>, transform_indices = @transform_2, window_bounds = array<i64: 3, 128>}, {pipeline_mode = #tpu.pipeline_mode<synchronous>, transform_indices = @transform_3, window_bounds = array<i64: 1, 128>}, {pipeline_mode = #tpu.pipeline_mode<synchronous>, transform_indices = @transform_4, window_bounds = array<i64: 128, 2>}, {pipeline_mode = #tpu.pipeline_mode<synchronous>, transform_indices = @transform_5, window_bounds = array<i64: 1, 2>}, {transform_indices = @transform_6, window_bounds = array<i64: 8, 1>}, {transform_indices = @transform_7, window_bounds = array<i64: 8, 1>}, {transform_indices = @transform_8, window_bounds = array<i64: 8, 1>}]} {
    %c0 = arith.constant 0 : index
    %0 = memref.load %arg1[%c0] : memref<1xf32, #tpu.memory_space<smem>>
    %c0_0 = arith.constant 0 : index
    %c0_1 = arith.constant 0 : index
    %1 = vector.load %arg2[%c0_0, %c0_1] : memref<8x3xf32, #tpu.memory_space<vmem>>, vector<8x3xf32>
    %c0_2 = arith.constant 0 : index
    %c0_3 = arith.constant 0 : index
    %2 = vector.load %arg3[%c0_2, %c0_3] : memref<3x128xf32, #tpu.memory_space<vmem>>, vector<3x128xf32>
    %cst = arith.constant dense<0.000000e+00> : vector<8x128xf32>
    %3 = tpu.matmul %1, %2, %cst {dimension_numbers = #tpu.dot_dimension_numbers<[1], [0], [0], [1], [0, 0, 1, 1], [], []>} : vector<8x3xf32>, vector<3x128xf32>, vector<8x128xf32> -> vector<8x128xf32>
    %c0_4 = arith.constant 0 : index
    %c0_5 = arith.constant 0 : index
    %4 = vector.load %arg4[%c0_4, %c0_5] : memref<1x128xf32, #tpu.memory_space<vmem>>, vector<1x128xf32>
    %5 = vector.broadcast %4 : vector<1x128xf32> to vector<8x128xf32>
    %6 = arith.addf %3, %5 : vector<8x128xf32>
    %cst_6 = arith.constant 0.000000e+00 : f32
    %7 = vector.broadcast %cst_6 : f32 to vector<8x128xf32>
    %8 = arith.maximumf %6, %7 : vector<8x128xf32>
    %c0_7 = arith.constant 0 : index
    %c0_8 = arith.constant 0 : index
    %9 = vector.load %arg5[%c0_7, %c0_8] : memref<128x2xf32, #tpu.memory_space<vmem>>, vector<128x2xf32>
    %cst_9 = arith.constant dense<0.000000e+00> : vector<8x2xf32>
    %10 = tpu.matmul %8, %9, %cst_9 {dimension_numbers = #tpu.dot_dimension_numbers<[1], [0], [0], [1], [0, 0, 1, 1], [], []>} : vector<8x128xf32>, vector<128x2xf32>, vector<8x2xf32> -> vector<8x2xf32>
    %c0_10 = arith.constant 0 : index
    %c0_11 = arith.constant 0 : index
    %11 = vector.load %arg6[%c0_10, %c0_11] : memref<1x2xf32, #tpu.memory_space<vmem>>, vector<1x2xf32>
    %12 = vector.broadcast %11 : vector<1x2xf32> to vector<8x2xf32>
    %13 = arith.addf %10, %12 : vector<8x2xf32>
    %14 = vector.extract_strided_slice %13 {offsets = [0, 0], sizes = [8, 1], strides = [1, 1]} : vector<8x2xf32> to vector<8x1xf32>
    %15 = vector.extract_strided_slice %13 {offsets = [0, 1], sizes = [8, 1], strides = [1, 1]} : vector<8x2xf32> to vector<8x1xf32>
    %cst_12 = arith.constant 0.000000e+00 : f32
    %16 = vector.broadcast %cst_12 : f32 to vector<8x1xf32>
    %17 = arith.maximumf %15, %16 : vector<8x1xf32>
    %18 = math.absf %15 : vector<8x1xf32>
    %cst_13 = arith.constant 0.000000e+00 : f32
    %19 = vector.broadcast %cst_13 : f32 to vector<8x1xf32>
    %20 = arith.subf %19, %18 : vector<8x1xf32>
    %21 = math.exp %20 : vector<8x1xf32>
    %22 = math.log1p %21 : vector<8x1xf32>
    %23 = arith.addf %17, %22 : vector<8x1xf32>
    %c0_14 = arith.constant 0 : index
    %c0_15 = arith.constant 0 : index
    %24 = vector.load %arg7[%c0_14, %c0_15] : memref<8x1xf32, #tpu.memory_space<vmem>>, vector<8x1xf32>
    %25 = arith.mulf %23, %24 : vector<8x1xf32>
    %26 = arith.addf %14, %25 : vector<8x1xf32>
    %27 = arith.mulf %24, %24 : vector<8x1xf32>
    %cst_16 = arith.constant -5.000000e-01 : f32
    %28 = vector.broadcast %cst_16 : f32 to vector<8x1xf32>
    %29 = arith.mulf %28, %27 : vector<8x1xf32>
    %30 = math.log %23 : vector<8x1xf32>
    %31 = arith.subf %29, %30 : vector<8x1xf32>
    %cst_17 = arith.constant 0.918938517 : f32
    %32 = vector.broadcast %cst_17 : f32 to vector<8x1xf32>
    %33 = arith.subf %31, %32 : vector<8x1xf32>
    %34 = math.tanh %26 : vector<8x1xf32>
    %35 = math.tanh %34 : vector<8x1xf32>
    %36 = arith.mulf %35, %35 : vector<8x1xf32>
    %cst_18 = arith.constant 1.000000e+00 : f32
    %37 = vector.broadcast %cst_18 : f32 to vector<8x1xf32>
    %38 = arith.subf %37, %36 : vector<8x1xf32>
    %cst_19 = arith.constant 1.000000e-07 : f32
    %39 = vector.broadcast %cst_19 : f32 to vector<8x1xf32>
    %40 = arith.addf %38, %39 : vector<8x1xf32>
    %41 = math.log %40 : vector<8x1xf32>
    %42 = arith.subf %33, %41 : vector<8x1xf32>
    %43 = vector.broadcast %0 : f32 to vector<8x1xf32>
    %44 = arith.mulf %34, %43 : vector<8x1xf32>
    %c0_20 = arith.constant 0 : index
    %c0_21 = arith.constant 0 : index
    %45 = vector.load %arg8[%c0_20, %c0_21] : memref<8x1xf32, #tpu.memory_space<vmem>>, vector<8x1xf32>
    tpu.vector_store %arg8[%c0_20, %c0_21], %44 {strides = array<i32>} : memref<8x1xf32, #tpu.memory_space<vmem>>, vector<8x1xf32>,
    %c0_22 = arith.constant 0 : index
    %c0_23 = arith.constant 0 : index
    %46 = vector.load %arg9[%c0_22, %c0_23] : memref<8x1xf32, #tpu.memory_space<vmem>>, vector<8x1xf32>
    tpu.vector_store %arg9[%c0_22, %c0_23], %42 {strides = array<i32>} : memref<8x1xf32, #tpu.memory_space<vmem>>, vector<8x1xf32>,
    return
  }
  func.func @transform_0(%arg0: i32) -> i32 {
    %c0_i32 = arith.constant 0 : i32
    %c0_i32_0 = arith.constant 0 : i32
    return %c0_i32 : i32
  }
  func.func @transform_1(%arg0: i32) -> (i32, i32) {
    %c0_i32 = arith.constant 0 : i32
    %c0_i32_0 = arith.constant 0 : i32
    return %arg0, %c0_i32 : i32, i32
  }
  func.func @transform_2(%arg0: i32) -> (i32, i32) {
    %c0_i32 = arith.constant 0 : i32
    %c0_i32_0 = arith.constant 0 : i32
    %c0_i32_1 = arith.constant 0 : i32
    return %c0_i32, %c0_i32_0 : i32, i32
  }
  func.func @transform_3(%arg0: i32) -> (i32, i32) {
    %c0_i32 = arith.constant 0 : i32
    %c0_i32_0 = arith.constant 0 : i32
    %c0_i32_1 = arith.constant 0 : i32
    return %c0_i32, %c0_i32_0 : i32, i32
  }
  func.func @transform_4(%arg0: i32) -> (i32, i32) {
    %c0_i32 = arith.constant 0 : i32
    %c0_i32_0 = arith.constant 0 : i32
    %c0_i32_1 = arith.constant 0 : i32
    return %c0_i32, %c0_i32_0 : i32, i32
  }
  func.func @transform_5(%arg0: i32) -> (i32, i32) {
    %c0_i32 = arith.constant 0 : i32
    %c0_i32_0 = arith.constant 0 : i32
    %c0_i32_1 = arith.constant 0 : i32
    return %c0_i32, %c0_i32_0 : i32, i32
  }
  func.func @transform_6(%arg0: i32) -> (i32, i32) {
    %c0_i32 = arith.constant 0 : i32
    %c0_i32_0 = arith.constant 0 : i32
    return %arg0, %c0_i32 : i32, i32
  }
  func.func @transform_7(%arg0: i32) -> (i32, i32) {
    %c0_i32 = arith.constant 0 : i32
    %c0_i32_0 = arith.constant 0 : i32
    return %arg0, %c0_i32 : i32, i32
  }
  func.func @transform_8(%arg0: i32) -> (i32, i32) {
    %c0_i32 = arith.constant 0 : i32
    %c0_i32_0 = arith.constant 0 : i32
    return %arg0, %c0_i32 : i32, i32
  }
}

</mosaic_0001>

<llo_original>
// kernel: tpu_custom_call.1
$region0: #{tpu_custom_call.1}
  #allocation0 [shape = 'u32[]', space=smem, size = 0x4, offset = 0x4, fixed_abs, tag = 'smem constant byte address 0x4 - core index']
  #allocation1 [shape = 'u32[72,128]{1,0:T(1,128)}', space=vmem, size = 0x9000, scoped, tag = 'internal scratch']
  #allocation2 [shape = 'f32[1]{0:T(128)S(6)}', space=smem, size = 0x200, scoped, tag = 'scoped memory for tpu_custom_call.1']
  %s0 = inlined_call_operand.<no memory space> [shape: f32[1], index: 0, kind: input, shape index: {}]
  %s1 = inlined_call_operand.vmem [shape: f32[8,3], index: 1, kind: input, shape index: {}]
  %s2 = inlined_call_operand.vmem [shape: f32[3,128], index: 2, kind: input, shape index: {}]
  %s3 = inlined_call_operand.vmem [shape: f32[1,128], index: 3, kind: input, shape index: {}]
  %s4 = inlined_call_operand.vmem [shape: f32[128,2], index: 4, kind: input, shape index: {}]
  %s5 = inlined_call_operand.vmem [shape: f32[1,2], index: 5, kind: input, shape index: {}]
  %s6 = inlined_call_operand.vmem [shape: f32[8,1], index: 6, kind: input, shape index: {}]
  %s7 = inlined_call_operand.vmem [shape: f32[8,1], index: 7, kind: output, shape index: {0}]
  %s8 = inlined_call_operand.vmem [shape: f32[8,1], index: 8, kind: output, shape index: {1}]
  %9 = xla_tuple %s7, %s8
  %s10 = sld [smem:[#allocation0]]
  $region46: #{tpu_custom_call.1} parent=0
    _
  %s12 = ssub.s32 1, %s10
  %s13 = scalar_select 0, %s12, %s10
  %14 = sst [smem:[#allocation2]] %s0
  // Predicated region
  $region2: #{tpu_custom_call.1} parent=0 // pred_check
    _
  $region3: #{tpu_custom_call.1} parent=0 // pred_check_branch
    %16 = sbr.rel (0) target = $region5
  $region4: #{tpu_custom_call.1} parent=0 // pred_region
    _
  $region5: #{tpu_custom_call.1} parent=0 // pred_fallthru
    _
  // Predicated region
  $region6: #{tpu_custom_call.1} parent=0 // pred_check
    _
  $region7: #{tpu_custom_call.1} parent=0 // pred_check_branch
    %18 = sbr.rel (0) target = $region9
  $region8: #{tpu_custom_call.1} parent=0 // pred_region
    _
  $region9: #{tpu_custom_call.1} parent=0 // pred_fallthru
    _
  // Predicated region
  $region10: #{tpu_custom_call.1} parent=0 // pred_check
    _
  $region11: #{tpu_custom_call.1} parent=0 // pred_check_branch
    %20 = sbr.rel (0) target = $region13
  $region12: #{tpu_custom_call.1} parent=0 // pred_region
    _
  $region13: #{tpu_custom_call.1} parent=0 // pred_fallthru
    _
  // Predicated region
  $region14: #{tpu_custom_call.1} parent=0 // pred_check
    _
  $region15: #{tpu_custom_call.1} parent=0 // pred_check_branch
    %22 = sbr.rel (0) target = $region17
  $region16: #{tpu_custom_call.1} parent=0 // pred_region
    _
  $region17: #{tpu_custom_call.1} parent=0 // pred_fallthru
    _
  // Predicated region
  $region18: #{tpu_custom_call.1} parent=0 // pred_check
    _
  $region19: #{tpu_custom_call.1} parent=0 // pred_check_branch
    %24 = sbr.rel (0) target = $region21
  $region20: #{tpu_custom_call.1} parent=0 // pred_region
    _
  $region21: #{tpu_custom_call.1} parent=0 // pred_fallthru
    _
  // Predicated region
  $region22: #{tpu_custom_call.1} parent=0 // pred_check
    _
  $region23: #{tpu_custom_call.1} parent=0 // pred_check_branch
    %26 = sbr.rel (0) target = $region25
  $region24: #{tpu_custom_call.1} parent=0 // pred_region
    _
  $region25: #{tpu_custom_call.1} parent=0 // pred_fallthru
    _
  // Predicated region
  $region26: #{tpu_custom_call.1} parent=0 // pred_check
    _
  $region27: #{tpu_custom_call.1} parent=0 // pred_check_branch
    %28 = sbr.rel (0) target = $region29
  $region28: #{tpu_custom_call.1} parent=0 // pred_region
    _
  $region29: #{tpu_custom_call.1} parent=0 // pred_fallthru
    _
  %s29 = sld [smem:[#allocation2]]
  %v30 = vld [vmem:[%s1] sm:$0xff]
  %v31 = vld [vmem:[%s2] sm:$0x7]
  %v32 = vld [vmem:[%s3] sm:$0x1]
  %v34 = vperm.slane %v32, 0
  %vm36 = vcmask 23552
  %v38 = vsel %vm36, %v30, 0
  %vm40 = vcmask 1042432
  %v42 = vsel %vm40, %v31, 0
  %44 = vmatpush.msra.mxu0 0.0
  %45 = vmatpush.msra.mxu0 0.0
  %46 = vmatpush.msra.mxu0 0.0
  %47 = vmatpush.msra.mxu0 0.0
  %48 = vmatpush.msra.mxu0 0.0
  %49 = vmatpush.msra.mxu0 0.0
  %50 = vmatpush.msra.mxu0 0.0
  %51 = vmatpush.msra.mxu0 0.0
  %52 = vmatpush.msra.mxu0 0.0
  %53 = vmatpush.msra.mxu0 0.0
  %54 = vmatpush.msra.mxu0 0.0
  %55 = vmatpush.msra.mxu0 0.0
  %56 = vmatpush.msra.mxu0 0.0
  %57 = vmatpush.msra.mxu0 0.0
  %58 = vmatpush.msra.mxu0 0.0
  %59 = vmatpush.msra.mxu0 %v42
  %60 = vmatmul.f32.gmra.mxu0 %v38
  %v61 = vpop.f32.mrf.mxu0
  %v62 = vadd.f32 %v34, %v61
  %63 = vdwg.mxu0
  %v64 = vmax.f32 %v62, 0.0
  %v65 = vld [vmem:[%s4] sm:$0xff]
  %v66 = vld [vmem:[%s4 + $0x8] sm:$0xff]
  %v67 = vld [vmem:[%s4 + $0x10] sm:$0xff]
  %v68 = vld [vmem:[%s4 + $0x18] sm:$0xff]
  %v69 = vld [vmem:[%s4 + $0x20] sm:$0xff]
  %v70 = vld [vmem:[%s4 + $0x28] sm:$0xff]
  %v71 = vld [vmem:[%s4 + $0x30] sm:$0xff]
  %v72 = vld [vmem:[%s4 + $0x38] sm:$0xff]
  %v73 = vld [vmem:[%s4 + $0x40] sm:$0xff]
  %v74 = vld [vmem:[%s4 + $0x48] sm:$0xff]
  %v75 = vld [vmem:[%s4 + $0x50] sm:$0xff]
  %v76 = vld [vmem:[%s4 + $0x58] sm:$0xff]
  %v77 = vld [vmem:[%s4 + $0x60] sm:$0xff]
  %v78 = vld [vmem:[%s4 + $0x68] sm:$0xff]
  %v79 = vld [vmem:[%s4 + $0x70] sm:$0xff]
  %v80 = vld [vmem:[%s4 + $0x78] sm:$0xff]
  %v81 = vld [vmem:[%s5] sm:$0x1]
  %v83 = vperm.slane %v81, 0
  %85 = vmatpush.msra.mxu0 %v80
  %86 = vmatpush.msra.mxu0 %v79
  %87 = vmatpush.msra.mxu0 %v78
  %88 = vmatpush.msra.mxu0 %v77
  %89 = vmatpush.msra.mxu0 %v76
  %90 = vmatpush.msra.mxu0 %v75
  %91 = vmatpush.msra.mxu0 %v74
  %92 = vmatpush.msra.mxu0 %v73
  %93 = vmatpush.msra.mxu0 %v72
  %94 = vmatpush.msra.mxu0 %v71
  %95 = vmatpush.msra.mxu0 %v70
  %96 = vmatpush.msra.mxu0 %v69
  %97 = vmatpush.msra.mxu0 %v68
  %98 = vmatpush.msra.mxu0 %v67
  %99 = vmatpush.msra.mxu0 %v66
  %100 = vmatpush.msra.mxu0 %v65
  %101 = vmatmul.f32.gmra.mxu0 %v64
  %v102 = vpop.f32.mrf.mxu0
  %v103 = vadd.f32 %v83, %v102
  %104 = vdwg.mxu0
  %v105 = vmax.f32 %v103, 0.0
  %v106 = vand.u32 2147483647, %v103
  %v107 = vsub.f32 0.0, %v106
  %v108 = vmul.f32 %v107, 1.442695
  %v109 = vpow.pop %v108
  %v110 = vadd.f32 %v109, 1.0
  %v111 = vlog2.pop %v110
  %v112 = vmul.f32 %v111, 0.6931472
  %v113 = vmul.f32 -0.5, %v109
  %v114 = vadd.f32 %v113, 1.0
  %v115 = vmul.f32 %v114, %v109
  %v116 = vand.u32 2147483647, %v109
  %vm117 = vcmp.lt.f32.partialorder %v116, 0.0004427343
  %v118 = vsel %vm117, %v115, %v112
  %v119 = vadd.f32 %v105, %v118
  %v120 = vld [vmem:[%s6] sm:$0xff]
  %122 = vrot.lane.b32.xlu0 %v120, 1
  %v123 = vpop.permute.xlu0 %122
  %v125 = vmul.f32 %v119, %v123
  %127 = vrot.lane.b32.xlu0 %v125, 127
  %v128 = vpop.permute.xlu0 %127
  %v130 = vadd.f32 %v103, %v128
  %v131 = vmul.f32 %v120, %v120
  %v132 = vmul.f32 %v131, -0.5
  %v133 = vlog2.pop %v119
  %v134 = vmul.f32 %v133, 0.6931472
  %136 = vrot.lane.b32.xlu0 %v134, 127
  %v137 = vpop.permute.xlu0 %136
  %v139 = vsub.f32 %v132, %v137
  %v140 = vsub.f32 %v139, 0.9189385
  %v141 = vtanh.pop %v130
  %v142 = vtanh.pop %v141
  %v143 = vmul.f32 %v142, %v142
  %v144 = vsub.f32 1.0, %v143
  %v145 = vadd.f32 %v144, 1e-07
  %v146 = vlog2.pop %v145
  %v147 = vmul.f32 %v146, 0.6931472
  %v148 = vsub.f32 %v140, %v147
  %v149 = vstv %s29
  %v150 = vmul.f32 %v141, %v149
  %vm151 = vcmask 7168
  %152 = vst.msk [vmem:[%s7] sm:$0xff] %vm151, %v150
  %153 = vst.msk [vmem:[%s8] sm:$0xff] %vm151, %v148
  // Predicated region
  $region30: #{tpu_custom_call.1} parent=0 // pred_check
    _
  $region31: #{tpu_custom_call.1} parent=0 // pred_check_branch
    %155 = sbr.rel (0) target = $region33
  $region32: #{tpu_custom_call.1} parent=0 // pred_region
    _
  $region33: #{tpu_custom_call.1} parent=0 // pred_fallthru
    _
  // Predicated region
  $region34: #{tpu_custom_call.1} parent=0 // pred_check
    _
  $region35: #{tpu_custom_call.1} parent=0 // pred_check_branch
    %157 = sbr.rel (0) target = $region37
  $region36: #{tpu_custom_call.1} parent=0 // pred_region
    _
  $region37: #{tpu_custom_call.1} parent=0 // pred_fallthru
    _
  // Predicated region
  $region38: #{tpu_custom_call.1} parent=0 // pred_check
    _
  $region39: #{tpu_custom_call.1} parent=0 // pred_check_branch
    %159 = sbr.rel (0) target = $region41
  $region40: #{tpu_custom_call.1} parent=0 // pred_region
    _
  $region41: #{tpu_custom_call.1} parent=0 // pred_fallthru
    _
  // Predicated region
  $region42: #{tpu_custom_call.1} parent=0 // pred_check
    _
  $region43: #{tpu_custom_call.1} parent=0 // pred_check_branch
    %161 = sbr.rel (0) target = $region45
  $region44: #{tpu_custom_call.1} parent=0 // pred_region
    _
  $region45: #{tpu_custom_call.1} parent=0 // pred_fallthru
    _

</llo_original>
